<compile_context>
chip_gen: v7x
topology: tpu7x:2x2x1
jax: 0.10.0
libtpu: 0.0.40
codegen_flags: <defaults>
</compile_context>

<pallas_src>
import functools

import jax
import jax.numpy as jnp
from jax import lax
from jax.experimental import pallas as pl
from jax.experimental.pallas import tpu as pltpu

_LANE = 128  # batch lands on lanes in the output, so tiles are 128-aligned


def _ipec_kernel(x_ref, wfe_ref, bf_ref, w2h_ref, b2_ref, w3t_ref, b3_ref,
                 out_ref):
    """One batch tile of the fused IPEC MLP.

    x_ref   : [TILE_B, F_in] bf16  packed [PA | PC | Common]
    wfe_ref : [F_in, 192]    bf16  cols 0:128 = block-diag(W_pa, W_pc),
                                   cols 128:192 = layer-2 slab of Common rows
    bf_ref  : [1, 128]       f32   concat(b_pa, b_pc)
    w2h_ref : [128, 64]      bf16  layer-2 slab seen by [h_pa | h_pc]
    b2_ref  : [1, 64]        f32
    w3t_ref : [8, 64]        bf16  W3 transposed in row 0, rows 1:8 zero
    b3_ref  : [1, 1]         f32
    out_ref : [1, TILE_B]    f32   lane-dense (batch on lanes)
    """
    x = x_ref[...]

    # Single x-LHS MXU stage: layer-1 (block-diagonal) + Common->layer-2 slab.
    y = jnp.dot(x, wfe_ref[...], preferred_element_type=jnp.float32)  # [B,192]
    h1 = jnp.maximum(y[:, :128] + bf_ref[...], 0.0)                   # [B,128]

    # Layer 2: Linear(138, 64) over concat([h_pa, h_pc, Common]).
    pre2 = (jnp.dot(h1.astype(jnp.bfloat16), w2h_ref[...],
                    preferred_element_type=jnp.float32)
            + y[:, 128:192] + b2_ref[...])
    h2 = jnp.maximum(pre2, 0.0)                                       # [B,64]

    # Layer 3: Linear(64, 1), emitted lane-dense as W3ᵀ · h2ᵀ -> [1, TILE_B].
    out8 = lax.dot_general(
        w3t_ref[...], h2.astype(jnp.bfloat16),
        dimension_numbers=(((1,), (1,)), ((), ())),
        preferred_element_type=jnp.float32)                           # [8, B]
    out_ref[...] = (out8[0:1, :] + b3_ref[...]).astype(out_ref.dtype)


def _choose_tile(batch, tile_b):
    """128-aligned batch tile; >= 2 grid steps when possible (v7x megacore)."""
    b_aligned = -(-batch // _LANE) * _LANE
    tile = min(tile_b, b_aligned)
    tile = max(_LANE, (tile // _LANE) * _LANE)
    half = (b_aligned // 2 // _LANE) * _LANE
    if b_aligned >= 2 * _LANE and tile > half:
        tile = max(_LANE, half)
    b_pad = -(-b_aligned // tile) * tile
    return tile, b_pad


def ipec_forward(pa_features, pc_features, common_features, fused, *,
                 tile_b=4096):
    """Batch-tiled fused Pallas forward. Returns [B, 1] f32."""
    B = pa_features.shape[0]
    x = jnp.concatenate([pa_features, pc_features, common_features],
                        axis=1).astype(jnp.bfloat16)
    f_in = x.shape[1]

    tile, b_pad = _choose_tile(B, tile_b)
    if b_pad != B:
        x = jnp.pad(x, ((0, b_pad - B), (0, 0)))
    grid = (b_pad // tile,)

    def resident(arr):
        # Whole-array block, same block every grid step -> stays in VMEM.
        return pl.BlockSpec(arr.shape, lambda i: (0, 0))

    flops = 2 * b_pad * (f_in * 192 + 128 * 64 + 64)
    bytes_accessed = (b_pad * f_in * 2 + b_pad * 4
                      + sum(int(v.size) * v.dtype.itemsize
                            for v in fused.values()))

    out = pl.pallas_call(
        _ipec_kernel,
        out_shape=jax.ShapeDtypeStruct((1, b_pad), jnp.float32),
        grid=grid,
        in_specs=[
            pl.BlockSpec((tile, f_in), lambda i: (i, 0)),   # packed inputs
            resident(fused["Wfe"]),
            resident(fused["bf"]),
            resident(fused["W2h"]),
            resident(fused["b2"]),
            resident(fused["W3t"]),
            resident(fused["b3"]),
        ],
        out_specs=pl.BlockSpec((1, tile), lambda i: (0, i)),  # lane-dense
        compiler_params=pltpu.CompilerParams(
            dimension_semantics=("parallel",),
            vmem_limit_bytes=32 * 1024 * 1024,
        ),
        cost_estimate=pl.CostEstimate(flops=flops, transcendentals=0,
                                      bytes_accessed=bytes_accessed),
    )(x, fused["Wfe"], fused["bf"], fused["W2h"],
      fused["b2"], fused["W3t"], fused["b3"])
    return out[0, :B].reshape(B, 1)


def init_params(key, pa_len=10, pc_len=10, common_len=10):
    """PyTorch-Linear-style uniform init (weights stored as [in, out])."""
    def linear(k, fan_in, fan_out):
        kw, kb = jax.random.split(k)
        bound = 1.0 / jnp.sqrt(fan_in)
        W = jax.random.uniform(kw, (fan_in, fan_out), jnp.float32, -bound, bound)
        b = jax.random.uniform(kb, (1, fan_out), jnp.float32, -bound, bound)
        return W, b

    k_pa, k_pc, k2, k3 = jax.random.split(key, 4)
    W_pa, b_pa = linear(k_pa, pa_len, 64)
    W_pc, b_pc = linear(k_pc, pc_len, 64)
    W2, b2 = linear(k2, 128 + common_len, 64)
    W3, b3 = linear(k3, 64, 1)
    return {"W_pa": W_pa, "b_pa": b_pa, "W_pc": W_pc, "b_pc": b_pc,
            "W2": W2, "b2": b2, "W3": W3, "b3": b3}


def pack_params(params, pa_len, pc_len, common_len):
    """Build the fused / bf16 weight layout consumed by the kernel."""
    f_in = pa_len + pc_len + common_len

    # Wfe: cols 0:128 = block-diag(W_pa, W_pc); cols 128:192 = W2 rows seen by
    # the Common features (all other rows zero).
    wfe = jnp.zeros((f_in, 192), jnp.float32)
    wfe = wfe.at[:pa_len, :64].set(params["W_pa"])
    wfe = wfe.at[pa_len:pa_len + pc_len, 64:128].set(params["W_pc"])
    wfe = wfe.at[pa_len + pc_len:, 128:].set(params["W2"][128:])
    bf = jnp.concatenate([params["b_pa"], params["b_pc"]], axis=1)

    # W3 transposed, zero-padded to 8 rows (only row 0 is real).
    w3t = jnp.zeros((8, 64), jnp.float32).at[0:1].set(params["W3"].T)

    return {
        "Wfe": wfe.astype(jnp.bfloat16),
        "bf": bf.astype(jnp.float32),
        "W2h": params["W2"][:128].astype(jnp.bfloat16),
        "b2": params["b2"].astype(jnp.float32),
        "W3t": w3t.astype(jnp.bfloat16),
        "b3": params["b3"].astype(jnp.float32),
    }


def ipec_forward_ref_f32(pa, pc, cm, params):
    """Pure-f32 reference of the original (unfused) module math."""
    h_pa = jnp.maximum(pa @ params["W_pa"] + params["b_pa"], 0.0)
    h_pc = jnp.maximum(pc @ params["W_pc"] + params["b_pc"], 0.0)
    h = jnp.concatenate([h_pa, h_pc, cm], axis=1)
    h2 = jnp.maximum(h @ params["W2"] + params["b2"], 0.0)
    return h2 @ params["W3"] + params["b3"]


def ipec_forward_ref_fused(pa, pc, cm, fused):
    """Pure-JAX mirror of the fused/bf16 kernel math (same casts)."""
    x = jnp.concatenate([pa, pc, cm], axis=1).astype(jnp.bfloat16)
    y = jnp.dot(x, fused["Wfe"], preferred_element_type=jnp.float32)
    h1 = jnp.maximum(y[:, :128] + fused["bf"], 0.0)
    pre2 = (jnp.dot(h1.astype(jnp.bfloat16), fused["W2h"],
                    preferred_element_type=jnp.float32)
            + y[:, 128:] + fused["b2"])
    h2 = jnp.maximum(pre2, 0.0)
    out = lax.dot_general(fused["W3t"][0:1], h2.astype(jnp.bfloat16),
                          dimension_numbers=(((1,), (1,)), ((), ())),
                          preferred_element_type=jnp.float32) + fused["b3"]
    return out.T                                             # [B, 1]


if __name__ == "__main__":
    key = jax.random.PRNGKey(0)
    k_params, k_pa, k_pc, k_cm = jax.random.split(key, 4)

    # Small demo shapes; B is deliberately not a multiple of the 128-lane tile
    # so the multi-tile grid + batch-padding + lane-dense output path is
    # exercised (grid=(3,)).
    B = 300
    PA_LEN = PC_LEN = COMMON_LEN = 10

    params = init_params(k_params, PA_LEN, PC_LEN, COMMON_LEN)
    fused = pack_params(params, PA_LEN, PC_LEN, COMMON_LEN)

    pa = jax.random.normal(k_pa, (B, PA_LEN), jnp.float32)
    pc = jax.random.normal(k_pc, (B, PC_LEN), jnp.float32)
    cm = jax.random.normal(k_cm, (B, COMMON_LEN), jnp.float32)

    fwd = jax.jit(functools.partial(ipec_forward, tile_b=128))
    out = jax.block_until_ready(fwd(pa, pc, cm, fused))

    assert out.shape == (B, 1), out.shape
    ref_fused = ipec_forward_ref_fused(pa, pc, cm, fused)   # same bf16 math
    ref_f32 = ipec_forward_ref_f32(pa, pc, cm, params)      # original module math
    assert jnp.allclose(out, ref_fused, atol=5e-3, rtol=5e-3)
    assert jnp.allclose(out, ref_f32, atol=5e-2, rtol=5e-2)

    print("KERNEL_OK")
</pallas_src>

<mosaic_0001>
module attributes {stable_mosaic.version = 11 : i64} {
  func.func @_ipec_kernel(%arg0: i32, %arg1: memref<128x30xbf16, #tpu.memory_space<vmem>>, %arg2: memref<30x192xbf16, #tpu.memory_space<vmem>>, %arg3: memref<1x128xf32, #tpu.memory_space<vmem>>, %arg4: memref<128x64xbf16, #tpu.memory_space<vmem>>, %arg5: memref<1x64xf32, #tpu.memory_space<vmem>>, %arg6: memref<8x64xbf16, #tpu.memory_space<vmem>>, %arg7: memref<1x1xf32, #tpu.memory_space<vmem>>, %arg8: memref<1x128xf32, #tpu.memory_space<vmem>>) attributes {dimension_semantics = [#tpu.dimension_semantics<parallel>], iteration_bounds = array<i64: 3>, scalar_prefetch = 0 : i64, scratch_operands = 0 : i64, tpu.core_type = #tpu.core_type<tc>, window_params = [{transform_indices = @transform_0, window_bounds = array<i64: 128, 30>}, {pipeline_mode = #tpu.pipeline_mode<synchronous>, transform_indices = @transform_1, window_bounds = array<i64: 30, 192>}, {pipeline_mode = #tpu.pipeline_mode<synchronous>, transform_indices = @transform_2, window_bounds = array<i64: 1, 128>}, {pipeline_mode = #tpu.pipeline_mode<synchronous>, transform_indices = @transform_3, window_bounds = array<i64: 128, 64>}, {pipeline_mode = #tpu.pipeline_mode<synchronous>, transform_indices = @transform_4, window_bounds = array<i64: 1, 64>}, {pipeline_mode = #tpu.pipeline_mode<synchronous>, transform_indices = @transform_5, window_bounds = array<i64: 8, 64>}, {pipeline_mode = #tpu.pipeline_mode<synchronous>, transform_indices = @transform_6, window_bounds = array<i64: 1, 1>}, {transform_indices = @transform_7, window_bounds = array<i64: 1, 128>}]} {
    %c0 = arith.constant 0 : index
    %c0_0 = arith.constant 0 : index
    %0 = vector.load %arg1[%c0, %c0_0] : memref<128x30xbf16, #tpu.memory_space<vmem>>, vector<128x30xbf16>
    %c0_1 = arith.constant 0 : index
    %c0_2 = arith.constant 0 : index
    %1 = vector.load %arg2[%c0_1, %c0_2] : memref<30x192xbf16, #tpu.memory_space<vmem>>, vector<30x192xbf16>
    %cst = arith.constant dense<0.000000e+00> : vector<128x192xf32>
    %2 = tpu.matmul %0, %1, %cst {dimension_numbers = #tpu.dot_dimension_numbers<[1], [0], [0], [1], [0, 0, 1, 1], [], []>} : vector<128x30xbf16>, vector<30x192xbf16>, vector<128x192xf32> -> vector<128x192xf32>
    %3 = vector.extract_strided_slice %2 {offsets = [0, 0], sizes = [128, 128], strides = [1, 1]} : vector<128x192xf32> to vector<128x128xf32>
    %c0_3 = arith.constant 0 : index
    %c0_4 = arith.constant 0 : index
    %4 = vector.load %arg3[%c0_3, %c0_4] : memref<1x128xf32, #tpu.memory_space<vmem>>, vector<1x128xf32>
    %5 = vector.broadcast %4 : vector<1x128xf32> to vector<128x128xf32>
    %6 = arith.addf %3, %5 : vector<128x128xf32>
    %cst_5 = arith.constant 0.000000e+00 : f32
    %7 = vector.broadcast %cst_5 : f32 to vector<128x128xf32>
    %8 = arith.maximumf %6, %7 : vector<128x128xf32>
    %9 = arith.truncf %8 : vector<128x128xf32> to vector<128x128xbf16>
    %c0_6 = arith.constant 0 : index
    %c0_7 = arith.constant 0 : index
    %10 = vector.load %arg4[%c0_6, %c0_7] : memref<128x64xbf16, #tpu.memory_space<vmem>>, vector<128x64xbf16>
    %cst_8 = arith.constant dense<0.000000e+00> : vector<128x64xf32>
    %11 = tpu.matmul %9, %10, %cst_8 {dimension_numbers = #tpu.dot_dimension_numbers<[1], [0], [0], [1], [0, 0, 1, 1], [], []>} : vector<128x128xbf16>, vector<128x64xbf16>, vector<128x64xf32> -> vector<128x64xf32>
    %12 = vector.extract_strided_slice %2 {offsets = [0, 128], sizes = [128, 64], strides = [1, 1]} : vector<128x192xf32> to vector<128x64xf32>
    %13 = arith.addf %11, %12 : vector<128x64xf32>
    %c0_9 = arith.constant 0 : index
    %c0_10 = arith.constant 0 : index
    %14 = vector.load %arg5[%c0_9, %c0_10] : memref<1x64xf32, #tpu.memory_space<vmem>>, vector<1x64xf32>
    %15 = vector.broadcast %14 : vector<1x64xf32> to vector<128x64xf32>
    %16 = arith.addf %13, %15 : vector<128x64xf32>
    %cst_11 = arith.constant 0.000000e+00 : f32
    %17 = vector.broadcast %cst_11 : f32 to vector<128x64xf32>
    %18 = arith.maximumf %16, %17 : vector<128x64xf32>
    %c0_12 = arith.constant 0 : index
    %c0_13 = arith.constant 0 : index
    %19 = vector.load %arg6[%c0_12, %c0_13] : memref<8x64xbf16, #tpu.memory_space<vmem>>, vector<8x64xbf16>
    %20 = arith.truncf %18 : vector<128x64xf32> to vector<128x64xbf16>
    %cst_14 = arith.constant dense<0.000000e+00> : vector<8x128xf32>
    %21 = tpu.matmul %19, %20, %cst_14 {dimension_numbers = #tpu.dot_dimension_numbers<[1], [1], [0], [0], [0, 0, 1, 0], [], []>} : vector<8x64xbf16>, vector<128x64xbf16>, vector<8x128xf32> -> vector<8x128xf32>
    %22 = vector.extract_strided_slice %21 {offsets = [0, 0], sizes = [1, 128], strides = [1, 1]} : vector<8x128xf32> to vector<1x128xf32>
    %c0_15 = arith.constant 0 : index
    %c0_16 = arith.constant 0 : index
    %23 = vector.load %arg7[%c0_15, %c0_16] : memref<1x1xf32, #tpu.memory_space<vmem>>, vector<1x1xf32>
    %24 = vector.broadcast %23 : vector<1x1xf32> to vector<1x128xf32>
    %25 = arith.addf %22, %24 : vector<1x128xf32>
    %c0_17 = arith.constant 0 : index
    %c0_18 = arith.constant 0 : index
    %26 = vector.load %arg8[%c0_17, %c0_18] : memref<1x128xf32, #tpu.memory_space<vmem>>, vector<1x128xf32>
    tpu.vector_store %arg8[%c0_17, %c0_18], %25 {strides = array<i32>} : memref<1x128xf32, #tpu.memory_space<vmem>>, vector<1x128xf32>,
    return
  }
  func.func @transform_0(%arg0: i32) -> (i32, i32) {
    %c0_i32 = arith.constant 0 : i32
    %c0_i32_0 = arith.constant 0 : i32
    return %arg0, %c0_i32 : i32, i32
  }
  func.func @transform_1(%arg0: i32) -> (i32, i32) {
    %c0_i32 = arith.constant 0 : i32
    %c0_i32_0 = arith.constant 0 : i32
    %c0_i32_1 = arith.constant 0 : i32
    return %c0_i32, %c0_i32_0 : i32, i32
  }
  func.func @transform_2(%arg0: i32) -> (i32, i32) {
    %c0_i32 = arith.constant 0 : i32
    %c0_i32_0 = arith.constant 0 : i32
    %c0_i32_1 = arith.constant 0 : i32
    return %c0_i32, %c0_i32_0 : i32, i32
  }
  func.func @transform_3(%arg0: i32) -> (i32, i32) {
    %c0_i32 = arith.constant 0 : i32
    %c0_i32_0 = arith.constant 0 : i32
    %c0_i32_1 = arith.constant 0 : i32
    return %c0_i32, %c0_i32_0 : i32, i32
  }
  func.func @transform_4(%arg0: i32) -> (i32, i32) {
    %c0_i32 = arith.constant 0 : i32
    %c0_i32_0 = arith.constant 0 : i32
    %c0_i32_1 = arith.constant 0 : i32
    return %c0_i32, %c0_i32_0 : i32, i32
  }
  func.func @transform_5(%arg0: i32) -> (i32, i32) {
    %c0_i32 = arith.constant 0 : i32
    %c0_i32_0 = arith.constant 0 : i32
    %c0_i32_1 = arith.constant 0 : i32
    return %c0_i32, %c0_i32_0 : i32, i32
  }
  func.func @transform_6(%arg0: i32) -> (i32, i32) {
    %c0_i32 = arith.constant 0 : i32
    %c0_i32_0 = arith.constant 0 : i32
    %c0_i32_1 = arith.constant 0 : i32
    return %c0_i32, %c0_i32_0 : i32, i32
  }
  func.func @transform_7(%arg0: i32) -> (i32, i32) {
    %c0_i32 = arith.constant 0 : i32
    %c0_i32_0 = arith.constant 0 : i32
    return %c0_i32, %arg0 : i32, i32
  }
}

</mosaic_0001>

<llo_original>
// kernel: ipec_forward.1
$region0: #{ipec_forward.1}
  #allocation0 [shape = 'u32[]', space=smem, size = 0x4, offset = 0x4, fixed_abs, tag = 'smem constant byte address 0x4 - core index']
  #allocation1 [shape = 'u32[144,128]{1,0:T(1,128)}', space=vmem, size = 0x12000, scoped, tag = 'internal scratch']
  #allocation2 [shape = 'f32[1,1]{1,0:T(1,128)S(1)}', space=vmem, size = 0x200, scoped, tag = 'scoped memory for ipec_forward.1']
  %s0 = inlined_call_operand.vmem [shape: bf16[384,30], index: 0, kind: input, shape index: {}]
  %s1 = inlined_call_operand.vmem [shape: bf16[30,192], index: 1, kind: input, shape index: {}]
  %s2 = inlined_call_operand.vmem [shape: f32[1,128], index: 2, kind: input, shape index: {}]
  %s3 = inlined_call_operand.vmem [shape: bf16[128,64], index: 3, kind: input, shape index: {}]
  %s4 = inlined_call_operand.vmem [shape: f32[1,64], index: 4, kind: input, shape index: {}]
  %s5 = inlined_call_operand.vmem [shape: bf16[8,64], index: 5, kind: input, shape index: {}]
  %s6 = inlined_call_operand.<no memory space> [shape: f32[1,1], index: 6, kind: input, shape index: {}]
  %s7 = inlined_call_operand.vmem [shape: f32[1,384], index: 7, kind: output, shape index: {}]
  %s8 = sld [smem:[#allocation0]]
  $region61: #{ipec_forward.1} parent=0
    _
  %s10 = ssub.s32 1, %s8
  %s11 = scalar_select 0, %s10, %s8
  %v12 = vstv %s6
  %13 = vst [vmem:[#allocation2] sm:$0x1] %v12
  loop: start=0, step=1, limit=5
  $region2: #{ipec_forward.1} parent=0 // loop_pre_header
    _
  $region3: #{ipec_forward.1} parent=0 // loop_header
    %s15 = sphi 0, %s19
    %p16 = scmp.ge.s32.totalorder %s15, 5
    %s25 = sphi 0, %s27
    %s28 = sphi 0, %s25
    %s29 = sphi 0, %s28
    %s45 = sphi 0, %s29
    %s49 = sphi 0, %s49
    %s51 = sphi 0, %s49
    %s52 = sphi 0, %s51
    %s66 = sphi 0, %s52
    %s70 = sphi 0, %s70
    %s72 = sphi 0, %s70
    %s73 = sphi 0, %s72
    %s87 = sphi 0, %s73
    %s91 = sphi 0, %s91
    %s93 = sphi 0, %s91
    %s94 = sphi 0, %s93
    %s108 = sphi 0, %s94
    %s112 = sphi 0, %s112
    %s114 = sphi 0, %s112
    %s115 = sphi 0, %s114
    %s129 = sphi 0, %s115
    %s133 = sphi 0, %s133
    %s135 = sphi 0, %s133
    %s136 = sphi 0, %s135
    %s150 = sphi 0, %s136
    %s154 = sphi 0, %s154
    %s156 = sphi 0, %s154
    %s157 = sphi 0, %s156
    %s171 = sphi 0, %s157
    %s177 = sphi 0, %s179
    %s180 = sphi 0, %s177
    %s181 = sphi 0, %s180
    %s197 = sphi 0, %s181
  $region4: #{ipec_forward.1} parent=0 // loop_header_branch
    %18 = sbr.rel (%p16) target = $region8
  $region5: #{ipec_forward.1} parent=0 // loop_body
    %s20 = ssub.s32 %s15, 1
    %s21 = ssub.s32 %s15, 2
    %s22 = sadd.s32 %s15, 1
    %s23 = ssub.s32 %s15, %s22
    %p24 = scmp.eq.s32.totalorder %s23, 0
    %s26 = sadd.s32 %s25, 1
    %s27 = scalar_select %p24, %s25, %s26
    %p30 = pneg %p24
    %p31 = scmp.eq.s32.totalorder %s15, 2
    %p32 = por %p30, %p31
    %p33 = scmp.ne.s32.totalorder %s25, %s28
    %p34 = scmp.eq.s32.totalorder %s15, 0
    %p35 = por %p33, %p34
    %p36 = scmp.ne.s32.totalorder %s25, %s28
    %p37 = scmp.eq.s32.totalorder %s20, 2
    %p38 = por %p36, %p37
    %p39 = scmp.ne.s32.totalorder %s28, %s29
    %p40 = scmp.eq.s32.totalorder %s20, 0
    %p41 = por %p39, %p40
    %p42 = scmp.ne.s32.totalorder %s28, %s29
    %p43 = scmp.eq.s32.totalorder %s21, 2
    %p44 = por %p42, %p43
    %p46 = scmp.ne.s32.totalorder %s29, %s45
    %p47 = scmp.eq.s32.totalorder %s21, 0
    %p48 = por %p46, %p47
    %s50 = sadd.s32 %s49, 1
    %p53 = scmp.eq.s32.totalorder %s15, 2
    %p54 = scmp.ne.s32.totalorder %s49, %s51
    %p55 = scmp.eq.s32.totalorder %s15, 0
    %p56 = por %p54, %p55
    %p57 = scmp.ne.s32.totalorder %s49, %s51
    %p58 = scmp.eq.s32.totalorder %s20, 2
    %p59 = por %p57, %p58
    %p60 = scmp.ne.s32.totalorder %s51, %s52
    %p61 = scmp.eq.s32.totalorder %s20, 0
    %p62 = por %p60, %p61
    %p63 = scmp.ne.s32.totalorder %s51, %s52
    %p64 = scmp.eq.s32.totalorder %s21, 2
    %p65 = por %p63, %p64
    %p67 = scmp.ne.s32.totalorder %s52, %s66
    %p68 = scmp.eq.s32.totalorder %s21, 0
    %p69 = por %p67, %p68
    %s71 = sadd.s32 %s70, 1
    %p74 = scmp.eq.s32.totalorder %s15, 2
    %p75 = scmp.ne.s32.totalorder %s70, %s72
    %p76 = scmp.eq.s32.totalorder %s15, 0
    %p77 = por %p75, %p76
    %p78 = scmp.ne.s32.totalorder %s70, %s72
    %p79 = scmp.eq.s32.totalorder %s20, 2
    %p80 = por %p78, %p79
    %p81 = scmp.ne.s32.totalorder %s72, %s73
    %p82 = scmp.eq.s32.totalorder %s20, 0
    %p83 = por %p81, %p82
    %p84 = scmp.ne.s32.totalorder %s72, %s73
    %p85 = scmp.eq.s32.totalorder %s21, 2
    %p86 = por %p84, %p85
    %p88 = scmp.ne.s32.totalorder %s73, %s87
    %p89 = scmp.eq.s32.totalorder %s21, 0
    %p90 = por %p88, %p89
    %s92 = sadd.s32 %s91, 1
    %p95 = scmp.eq.s32.totalorder %s15, 2
    %p96 = scmp.ne.s32.totalorder %s91, %s93
    %p97 = scmp.eq.s32.totalorder %s15, 0
    %p98 = por %p96, %p97
    %p99 = scmp.ne.s32.totalorder %s91, %s93
    %p100 = scmp.eq.s32.totalorder %s20, 2
    %p101 = por %p99, %p100
    %p102 = scmp.ne.s32.totalorder %s93, %s94
    %p103 = scmp.eq.s32.totalorder %s20, 0
    %p104 = por %p102, %p103
    %p105 = scmp.ne.s32.totalorder %s93, %s94
    %p106 = scmp.eq.s32.totalorder %s21, 2
    %p107 = por %p105, %p106
    %p109 = scmp.ne.s32.totalorder %s94, %s108
    %p110 = scmp.eq.s32.totalorder %s21, 0
    %p111 = por %p109, %p110
    %s113 = sadd.s32 %s112, 1
    %p116 = scmp.eq.s32.totalorder %s15, 2
    %p117 = scmp.ne.s32.totalorder %s112, %s114
    %p118 = scmp.eq.s32.totalorder %s15, 0
    %p119 = por %p117, %p118
    %p120 = scmp.ne.s32.totalorder %s112, %s114
    %p121 = scmp.eq.s32.totalorder %s20, 2
    %p122 = por %p120, %p121
    %p123 = scmp.ne.s32.totalorder %s114, %s115
    %p124 = scmp.eq.s32.totalorder %s20, 0
    %p125 = por %p123, %p124
    %p126 = scmp.ne.s32.totalorder %s114, %s115
    %p127 = scmp.eq.s32.totalorder %s21, 2
    %p128 = por %p126, %p127
    %p130 = scmp.ne.s32.totalorder %s115, %s129
    %p131 = scmp.eq.s32.totalorder %s21, 0
    %p132 = por %p130, %p131
    %s134 = sadd.s32 %s133, 1
    %p137 = scmp.eq.s32.totalorder %s15, 2
    %p138 = scmp.ne.s32.totalorder %s133, %s135
    %p139 = scmp.eq.s32.totalorder %s15, 0
    %p140 = por %p138, %p139
    %p141 = scmp.ne.s32.totalorder %s133, %s135
    %p142 = scmp.eq.s32.totalorder %s20, 2
    %p143 = por %p141, %p142
    %p144 = scmp.ne.s32.totalorder %s135, %s136
    %p145 = scmp.eq.s32.totalorder %s20, 0
    %p146 = por %p144, %p145
    %p147 = scmp.ne.s32.totalorder %s135, %s136
    %p148 = scmp.eq.s32.totalorder %s21, 2
    %p149 = por %p147, %p148
    %p151 = scmp.ne.s32.totalorder %s136, %s150
    %p152 = scmp.eq.s32.totalorder %s21, 0
    %p153 = por %p151, %p152
    %s155 = sadd.s32 %s154, 1
    %p158 = scmp.eq.s32.totalorder %s15, 2
    %p159 = scmp.ne.s32.totalorder %s154, %s156
    %p160 = scmp.eq.s32.totalorder %s15, 0
    %p161 = por %p159, %p160
    %p162 = scmp.ne.s32.totalorder %s154, %s156
    %p163 = scmp.eq.s32.totalorder %s20, 2
    %p164 = por %p162, %p163
    %p165 = scmp.ne.s32.totalorder %s156, %s157
    %p166 = scmp.eq.s32.totalorder %s20, 0
    %p167 = por %p165, %p166
    %p168 = scmp.ne.s32.totalorder %s156, %s157
    %p169 = scmp.eq.s32.totalorder %s21, 2
    %p170 = por %p168, %p169
    %p172 = scmp.ne.s32.totalorder %s157, %s171
    %p173 = scmp.eq.s32.totalorder %s21, 0
    %p174 = por %p172, %p173
    %s175 = ssub.s32 %s15, %s22
    %p176 = scmp.eq.s32.totalorder %s175, 0
    %s178 = sadd.s32 %s177, 1
    %s179 = scalar_select %p176, %s177, %s178
    %p182 = pneg %p176
    %p183 = scmp.eq.s32.totalorder %s15, 2
    %p184 = por %p182, %p183
    %p185 = scmp.ne.s32.totalorder %s177, %s180
    %p186 = scmp.eq.s32.totalorder %s15, 0
    %p187 = por %p185, %p186
    %p188 = scmp.ne.s32.totalorder %s177, %s180
    %p189 = scmp.eq.s32.totalorder %s20, 2
    %p190 = por %p188, %p189
    %p191 = scmp.ne.s32.totalorder %s180, %s181
    %p192 = scmp.eq.s32.totalorder %s20, 0
    %p193 = por %p191, %p192
    %p194 = scmp.ne.s32.totalorder %s180, %s181
    %p195 = scmp.eq.s32.totalorder %s21, 2
    %p196 = por %p194, %p195
    %p198 = scmp.ne.s32.totalorder %s181, %s197
    %p199 = scmp.eq.s32.totalorder %s21, 0
    %p200 = por %p198, %p199
    %p201 = scmp.le.s32.totalorder 1, %s15
    %p202 = scmp.lt.s32.totalorder %s15, 4
    %p203 = pnand %p201, %p202
    %p204 = pneg %p203
    // Predicated region
    $region9: #{ipec_forward.1} parent=5 // pred_check
      _
    $region10: #{ipec_forward.1} parent=5 // pred_check_branch
      %206 = sbr.rel (%p203) target = $region12
    $region11: #{ipec_forward.1} parent=5 // pred_region
      %s207 = ssub.s32 %s15, 1
      // Predicated region
      $region13: #{ipec_forward.1} parent=11 // pred_check
        %p208 = pneg %p62
      $region14: #{ipec_forward.1} parent=11 // pred_check_branch
        %210 = sbr.rel (%p208) target = $region16
      $region15: #{ipec_forward.1} parent=11 // pred_region
        _
      $region16: #{ipec_forward.1} parent=11 // pred_fallthru
        _
      // Predicated region
      $region17: #{ipec_forward.1} parent=11 // pred_check
        %p211 = pneg %p83
      $region18: #{ipec_forward.1} parent=11 // pred_check_branch
        %213 = sbr.rel (%p211) target = $region20
      $region19: #{ipec_forward.1} parent=11 // pred_region
        _
      $region20: #{ipec_forward.1} parent=11 // pred_fallthru
        _
      // Predicated region
      $region21: #{ipec_forward.1} parent=11 // pred_check
        %p214 = pneg %p104
      $region22: #{ipec_forward.1} parent=11 // pred_check_branch
        %216 = sbr.rel (%p214) target = $region24
      $region23: #{ipec_forward.1} parent=11 // pred_region
        _
      $region24: #{ipec_forward.1} parent=11 // pred_fallthru
        _
      // Predicated region
      $region25: #{ipec_forward.1} parent=11 // pred_check
        %p217 = pneg %p125
      $region26: #{ipec_forward.1} parent=11 // pred_check_branch
        %219 = sbr.rel (%p217) target = $region28
      $region27: #{ipec_forward.1} parent=11 // pred_region
        _
      $region28: #{ipec_forward.1} parent=11 // pred_fallthru
        _
      // Predicated region
      $region29: #{ipec_forward.1} parent=11 // pred_check
        %p220 = pneg %p146
      $region30: #{ipec_forward.1} parent=11 // pred_check_branch
        %222 = sbr.rel (%p220) target = $region32
      $region31: #{ipec_forward.1} parent=11 // pred_region
        _
      $region32: #{ipec_forward.1} parent=11 // pred_fallthru
        _
      // Predicated region
      $region33: #{ipec_forward.1} parent=11 // pred_check
        %p223 = pneg %p167
      $region34: #{ipec_forward.1} parent=11 // pred_check_branch
        %225 = sbr.rel (%p223) target = $region36
      $region35: #{ipec_forward.1} parent=11 // pred_region
        _
      $region36: #{ipec_forward.1} parent=11 // pred_fallthru
        _
    $region12: #{ipec_forward.1} parent=5 // pred_fallthru
      _
    %p226 = scmp.lt.s32.totalorder %s15, 3
    // Predicated region
    $region37: #{ipec_forward.1} parent=5 // pred_check
      %p227 = pneg %p226
    $region38: #{ipec_forward.1} parent=5 // pred_check_branch
      %229 = sbr.rel (%p227) target = $region40
    $region39: #{ipec_forward.1} parent=5 // pred_region
      // Predicated region
      $region41: #{ipec_forward.1} parent=39 // pred_check
        %p230 = pneg %p35
      $region42: #{ipec_forward.1} parent=39 // pred_check_branch
        %232 = sbr.rel (%p230) target = $region44
      $region43: #{ipec_forward.1} parent=39 // pred_region
        %s233 = smul.u32 16, %s15
        %p234 = scmp.lt.s32.totalorder %s233, 47
        %s235 = scalar_select %p234, %s233, 47
        %s236 = smul.addr %s235, 4
        %s237 = scalar_lea.vmem %s0, %s236
        %s238 = smul.u32 16, %s15
      $region44: #{ipec_forward.1} parent=39 // pred_fallthru
        _
    $region40: #{ipec_forward.1} parent=5 // pred_fallthru
      _
    %p239 = scmp.le.s32.totalorder 1, %s15
    %p240 = scmp.lt.s32.totalorder %s15, 4
    %p241 = pnand %p239, %p240
    %p242 = pneg %p241
    // Predicated region
    $region45: #{ipec_forward.1} parent=5 // pred_check
      _
    $region46: #{ipec_forward.1} parent=5 // pred_check_branch
      %244 = sbr.rel (%p241) target = $region48
    $region47: #{ipec_forward.1} parent=5 // pred_region
      %s245 = ssub.s32 %s15, 1
      %s246 = smul.u32 16, %s20
      %p247 = scmp.lt.s32.totalorder %s246, 47
      %s248 = scalar_select %p247, %s246, 47
      %s249 = smul.addr %s248, 4
      %s250 = scalar_lea.vmem %s0, %s249
      %p251 = pneg %p41
      %p252 = pneg %p38
      %p253 = pneg %p62
      %p254 = pneg %p59
      %p255 = pneg %p83
      %p256 = pneg %p80
      %p257 = pneg %p104
      %p258 = pneg %p101
      %p259 = pneg %p125
      %p260 = pneg %p122
      %p261 = pneg %p146
      %p262 = pneg %p143
      %p263 = pneg %p167
      %p264 = pneg %p164
      %p265 = pneg %p193
      %p266 = pneg %p190
      %p267 = scmp.lt.s32.totalorder %s20, 2
      %s268 = scalar_select %p267, %s20, 2
      %s269 = scalar_lea.vmem %s7, %s268
      %s270 = smul.u32 16, %s20
      %p271 = scmp.lt.s32.totalorder %s270, 47
      %s272 = scalar_select %p271, %s270, 47
      %s273 = smul.addr %s272, 4
      %s274 = scalar_lea.vmem %s0, %s273
      %s275 = smul.u32 16, %s20
      %p276 = scmp.lt.s32.totalorder %s20, 2
      %s277 = scalar_select %p276, %s20, 2
      %s278 = scalar_lea.vmem %s7, %s277
      %v280 = vld [vmem:[%s274] sm:$0xf]
      %v281 = vld [vmem:[%s274 + $0x4] sm:$0xf]
      %v282 = vld [vmem:[%s274 + $0x8] sm:$0xf]
      %v283 = vld [vmem:[%s274 + $0xc] sm:$0xf]
      %v284 = vld [vmem:[%s274 + $0x10] sm:$0xf]
      %v285 = vld [vmem:[%s274 + $0x14] sm:$0xf]
      %v286 = vld [vmem:[%s274 + $0x18] sm:$0xf]
      %v287 = vld [vmem:[%s274 + $0x1c] sm:$0xf]
      %v288 = vld [vmem:[%s274 + $0x20] sm:$0xf]
      %v289 = vld [vmem:[%s274 + $0x24] sm:$0xf]
      %v290 = vld [vmem:[%s274 + $0x28] sm:$0xf]
      %v291 = vld [vmem:[%s274 + $0x2c] sm:$0xf]
      %v292 = vld [vmem:[%s274 + $0x30] sm:$0xf]
      %v293 = vld [vmem:[%s274 + $0x34] sm:$0xf]
      %v294 = vld [vmem:[%s274 + $0x38] sm:$0xf]
      %v295 = vld [vmem:[%s274 + $0x3c] sm:$0xf]
      %v296 = vld [vmem:[%s1] sm:$0xff]
      %v297 = vld [vmem:[%s1 + $0x8] sm:$0xff]
      %v298 = vld [vmem:[%s1 + $0x10] sm:$0xff]
      %v299 = vld [vmem:[%s1 + $0x18] sm:$0x77]
      %v316 = vunpack.c.l.b16 %v280
      %v317 = vunpack.c.l.b16 %v281
      %v318 = vunpack.c.l.b16 %v282
      %v319 = vunpack.c.l.b16 %v283
      %v320 = vunpack.c.l.b16 %v284
      %v321 = vunpack.c.l.b16 %v285
      %v322 = vunpack.c.l.b16 %v286
      %v323 = vunpack.c.l.b16 %v287
      %v324 = vunpack.c.l.b16 %v288
      %v325 = vunpack.c.l.b16 %v289
      %v326 = vunpack.c.l.b16 %v290
      %v327 = vunpack.c.l.b16 %v291
      %v328 = vunpack.c.l.b16 %v292
      %v329 = vunpack.c.l.b16 %v293
      %v330 = vunpack.c.l.b16 %v294
      %v331 = vunpack.c.l.b16 %v295
      %v332 = vpack.c.b16 %v317, %v316
      %v333 = vpack.c.b16 %v319, %v318
      %v334 = vpack.c.b16 %v321, %v320
      %v335 = vpack.c.b16 %v323, %v322
      %v336 = vpack.c.b16 %v325, %v324
      %v337 = vpack.c.b16 %v327, %v326
      %v338 = vpack.c.b16 %v329, %v328
      %v339 = vpack.c.b16 %v331, %v330
      %v344 = vunpack.c.l.b16 %v296
      %v345 = vunpack.c.h.b16 %v296
      %v346 = vunpack.c.l.b16 %v297
      %v347 = vunpack.c.h.b16 %v297
      %v348 = vunpack.c.l.b16 %v298
      %v349 = vunpack.c.h.b16 %v298
      %v350 = vunpack.c.l.b16 %v299
      %v351 = vunpack.c.h.b16 %v299
      %v352 = vpack.c.b16 %v346, %v344
      %v353 = vpack.c.b16 %v347, %v345
      %v354 = vpack.c.b16 %v350, %v348
      %v355 = vpack.c.b16 %v351, %v349
      %vm358 = vcmask 244736
      %v360 = vsel %vm358, %v332, 0
      %v363 = vsel %vm358, %v333, 0
      %v366 = vsel %vm358, %v334, 0
      %v369 = vsel %vm358, %v335, 0
      %v372 = vsel %vm358, %v336, 0
      %v375 = vsel %vm358, %v337, 0
      %v378 = vsel %vm358, %v338, 0
      %v381 = vsel %vm358, %v339, 0
      %vm383 = vcmask 1046528
      %v385 = vsel %vm383, %v354, 0
      %v388 = vsel %vm383, %v355, 0
      %390 = vmatprep.subr.bf16.mxu0 %v353
      %391 = vmatpush1.bf16.msra.mxu0 %v352
      %392 = vmatprep.subr.bf16.mxu0 %v388
      %393 = vmatpush1.bf16.msra.mxu0 %v385
      %394 = vmatprep.subr.bf16.mxu0 0
      %395 = vmatpush1.bf16.msra.mxu0 0
      %396 = vmatprep.subr.bf16.mxu0 0
      %397 = vmatpush1.bf16.msra.mxu0 0
      %398 = vmatprep.subr.bf16.mxu0 0
      %399 = vmatpush1.bf16.msra.mxu0 0
      %400 = vmatprep.subr.bf16.mxu0 0
      %401 = vmatpush1.bf16.msra.mxu0 0
      %402 = vmatprep.subr.bf16.mxu0 0
      %403 = vmatpush1.bf16.msra.mxu0 0
      %404 = vmatprep.subr.bf16.mxu0 0
      %405 = vmatpush1.bf16.msra.mxu0 0
      %406 = vmatprep.subr.bf16.mxu0 0
      %407 = vmatpush1.bf16.msra.mxu0 0
      %408 = vmatprep.subr.bf16.mxu0 0
      %409 = vmatpush1.bf16.msra.mxu0 0
      %410 = vmatprep.subr.bf16.mxu0 0
      %411 = vmatpush1.bf16.msra.mxu0 0
      %412 = vmatprep.subr.bf16.mxu0 0
      %413 = vmatpush1.bf16.msra.mxu0 0
      %414 = vmatprep.subr.bf16.mxu0 0
      %415 = vmatpush1.bf16.msra.mxu0 0
      %416 = vmatprep.subr.bf16.mxu0 0
      %417 = vmatpush1.bf16.msra.mxu0 0
      %418 = vmatprep.subr.bf16.mxu0 0
      %419 = vmatpush1.bf16.msra.mxu0 0
      %420 = vmatprep.subr.bf16.mxu0 0
      %421 = vmatpush1.bf16.msra.mxu0 0
      %422 = vmatprep.mubr.bf16.mxu0 0
      %423 = vmatmul.mubr.bf16.gmra.mrb[0].mxu0 %v360
      %v424 = vpop.f32.mrb[0].mxu0
      %v425 = vadd.f32 0.0, %v424
      %v426 = vpop.f32.mrb[0].mxu0
      %v427 = vadd.f32 0.0, %v426
      %v428 = vpop.f32.mrb[0].mxu0
      %v429 = vadd.f32 0.0, %v428
      %v430 = vpop.f32.mrb[0].mxu0
      %v431 = vadd.f32 0.0, %v430
      %432 = vmatprep.mubr.bf16.mxu0 0
      %433 = vmatmul.mubr.bf16.gmra.mrb[0].mxu0 %v363
      %v434 = vpop.f32.mrb[0].mxu0
      %v435 = vadd.f32 0.0, %v434
      %v436 = vpop.f32.mrb[0].mxu0
      %v437 = vadd.f32 0.0, %v436
      %v438 = vpop.f32.mrb[0].mxu0
      %v439 = vadd.f32 0.0, %v438
      %v440 = vpop.f32.mrb[0].mxu0
      %v441 = vadd.f32 0.0, %v440
      %442 = vmatprep.mubr.bf16.mxu0 0
      %443 = vmatmul.mubr.bf16.gmra.mrb[0].mxu0 %v366
      %v444 = vpop.f32.mrb[0].mxu0
      %v445 = vadd.f32 0.0, %v444
      %v446 = vpop.f32.mrb[0].mxu0
      %v447 = vadd.f32 0.0, %v446
      %v448 = vpop.f32.mrb[0].mxu0
      %v449 = vadd.f32 0.0, %v448
      %v450 = vpop.f32.mrb[0].mxu0
      %v451 = vadd.f32 0.0, %v450
      %452 = vmatprep.mubr.bf16.mxu0 0
      %453 = vmatmul.mubr.bf16.gmra.mrb[0].mxu0 %v369
      %v454 = vpop.f32.mrb[0].mxu0
      %v455 = vadd.f32 0.0, %v454
      %v456 = vpop.f32.mrb[0].mxu0
      %v457 = vadd.f32 0.0, %v456
      %v458 = vpop.f32.mrb[0].mxu0
      %v459 = vadd.f32 0.0, %v458
      %v460 = vpop.f32.mrb[0].mxu0
      %v461 = vadd.f32 0.0, %v460
      %462 = vmatprep.mubr.bf16.mxu0 0
      %463 = vmatmul.mubr.bf16.gmra.mrb[0].mxu0 %v372
      %v464 = vpop.f32.mrb[0].mxu0
      %v465 = vadd.f32 0.0, %v464
      %v466 = vpop.f32.mrb[0].mxu0
      %v467 = vadd.f32 0.0, %v466
      %v468 = vpop.f32.mrb[0].mxu0
      %v469 = vadd.f32 0.0, %v468
      %v470 = vpop.f32.mrb[0].mxu0
      %v471 = vadd.f32 0.0, %v470
      %472 = vmatprep.mubr.bf16.mxu0 0
      %473 = vmatmul.mubr.bf16.gmra.mrb[0].mxu0 %v375
      %v474 = vpop.f32.mrb[0].mxu0
      %v475 = vadd.f32 0.0, %v474
      %v476 = vpop.f32.mrb[0].mxu0
      %v477 = vadd.f32 0.0, %v476
      %v478 = vpop.f32.mrb[0].mxu0
      %v479 = vadd.f32 0.0, %v478
      %v480 = vpop.f32.mrb[0].mxu0
      %v481 = vadd.f32 0.0, %v480
      %482 = vmatprep.mubr.bf16.mxu0 0
      %483 = vmatmul.mubr.bf16.gmra.mrb[0].mxu0 %v378
      %v484 = vpop.f32.mrb[0].mxu0
      %v485 = vadd.f32 0.0, %v484
      %v486 = vpop.f32.mrb[0].mxu0
      %v487 = vadd.f32 0.0, %v486
      %v488 = vpop.f32.mrb[0].mxu0
      %v489 = vadd.f32 0.0, %v488
      %v490 = vpop.f32.mrb[0].mxu0
      %v491 = vadd.f32 0.0, %v490
      %492 = vmatprep.mubr.bf16.mxu0 0
      %493 = vmatmul.mubr.bf16.gmra.mrb[0].mxu0 %v381
      %v494 = vpop.f32.mrb[0].mxu0
      %v495 = vadd.f32 0.0, %v494
      %v496 = vpop.f32.mrb[0].mxu0
      %v497 = vadd.f32 0.0, %v496
      %v498 = vpop.f32.mrb[0].mxu0
      %v499 = vadd.f32 0.0, %v498
      %v500 = vpop.f32.mrb[0].mxu0
      %v501 = vadd.f32 0.0, %v500
      %502 = vdwg.mxu0
      %v503 = vld [vmem:[%s2] sm:$0x1]
      %v505 = vlaneseq
      %v506 = vshrl.u32 %v505, 7
      %v507 = vsub.s32 0, %v506
      %v508 = vrot.slane %v503, %v507
      %v510 = vadd.f32 %v425, %v508
      %v511 = vadd.f32 %v429, %v508
      %v512 = vadd.f32 %v435, %v508
      %v513 = vadd.f32 %v439, %v508
      %v514 = vadd.f32 %v445, %v508
      %v515 = vadd.f32 %v449, %v508
      %v516 = vadd.f32 %v455, %v508
      %v517 = vadd.f32 %v459, %v508
      %v518 = vadd.f32 %v465, %v508
      %v519 = vadd.f32 %v469, %v508
      %v520 = vadd.f32 %v475, %v508
      %v521 = vadd.f32 %v479, %v508
      %v522 = vadd.f32 %v485, %v508
      %v523 = vadd.f32 %v489, %v508
      %v524 = vadd.f32 %v495, %v508
      %v525 = vadd.f32 %v499, %v508
      %v526 = vmax.f32 %v510, 0.0
      %v527 = vmax.f32 %v511, 0.0
      %v528 = vmax.f32 %v512, 0.0
      %v529 = vmax.f32 %v513, 0.0
      %v530 = vmax.f32 %v514, 0.0
      %v531 = vmax.f32 %v515, 0.0
      %v532 = vmax.f32 %v516, 0.0
      %v533 = vmax.f32 %v517, 0.0
      %v534 = vmax.f32 %v518, 0.0
      %v535 = vmax.f32 %v519, 0.0
      %v536 = vmax.f32 %v520, 0.0
      %v537 = vmax.f32 %v521, 0.0
      %v538 = vmax.f32 %v522, 0.0
      %v539 = vmax.f32 %v523, 0.0
      %v540 = vmax.f32 %v524, 0.0
      %v541 = vmax.f32 %v525, 0.0
      %v542 = vpack.c.bf16 %v527, %v526
      %v543 = vpack.c.bf16 %v529, %v528
      %v544 = vpack.c.bf16 %v531, %v530
      %v545 = vpack.c.bf16 %v533, %v532
      %v546 = vpack.c.bf16 %v535, %v534
      %v547 = vpack.c.bf16 %v537, %v536
      %v548 = vpack.c.bf16 %v539, %v538
      %v549 = vpack.c.bf16 %v541, %v540
      %v550 = vld [vmem:[%s3] sm:$0xf]
      %v551 = vld [vmem:[%s3 + $0x4] sm:$0xf]
      %v552 = vld [vmem:[%s3 + $0x8] sm:$0xf]
      %v553 = vld [vmem:[%s3 + $0xc] sm:$0xf]
      %v554 = vld [vmem:[%s3 + $0x10] sm:$0xf]
      %v555 = vld [vmem:[%s3 + $0x14] sm:$0xf]
      %v556 = vld [vmem:[%s3 + $0x18] sm:$0xf]
      %v557 = vld [vmem:[%s3 + $0x1c] sm:$0xf]
      %v558 = vld [vmem:[%s3 + $0x20] sm:$0xf]
      %v559 = vld [vmem:[%s3 + $0x24] sm:$0xf]
      %v560 = vld [vmem:[%s3 + $0x28] sm:$0xf]
      %v561 = vld [vmem:[%s3 + $0x2c] sm:$0xf]
      %v562 = vld [vmem:[%s3 + $0x30] sm:$0xf]
      %v563 = vld [vmem:[%s3 + $0x34] sm:$0xf]
      %v564 = vld [vmem:[%s3 + $0x38] sm:$0xf]
      %v565 = vld [vmem:[%s3 + $0x3c] sm:$0xf]
      %v582 = vunpack.c.l.b16 %v550
      %v583 = vunpack.c.l.b16 %v551
      %v584 = vunpack.c.l.b16 %v552
      %v585 = vunpack.c.l.b16 %v553
      %v586 = vunpack.c.l.b16 %v554
      %v587 = vunpack.c.l.b16 %v555
      %v588 = vunpack.c.l.b16 %v556
      %v589 = vunpack.c.l.b16 %v557
      %v590 = vunpack.c.l.b16 %v558
      %v591 = vunpack.c.l.b16 %v559
      %v592 = vunpack.c.l.b16 %v560
      %v593 = vunpack.c.l.b16 %v561
      %v594 = vunpack.c.l.b16 %v562
      %v595 = vunpack.c.l.b16 %v563
      %v596 = vunpack.c.l.b16 %v564
      %v597 = vunpack.c.l.b16 %v565
      %v598 = vpack.c.b16 %v583, %v582
      %v599 = vpack.c.b16 %v585, %v584
      %v600 = vpack.c.b16 %v587, %v586
      %v601 = vpack.c.b16 %v589, %v588
      %v602 = vpack.c.b16 %v591, %v590
      %v603 = vpack.c.b16 %v593, %v592
      %v604 = vpack.c.b16 %v595, %v594
      %v605 = vpack.c.b16 %v597, %v596
      %614 = vmatprep.subr.bf16.mxu0 0
      %615 = vmatpush1.bf16.msra.mxu0 %v598
      %616 = vmatprep.subr.bf16.mxu0 0
      %617 = vmatpush1.bf16.msra.mxu0 %v599
      %618 = vmatprep.subr.bf16.mxu0 0
      %619 = vmatpush1.bf16.msra.mxu0 %v600
      %620 = vmatprep.subr.bf16.mxu0 0
      %621 = vmatpush1.bf16.msra.mxu0 %v601
      %622 = vmatprep.subr.bf16.mxu0 0
      %623 = vmatpush1.bf16.msra.mxu0 %v602
      %624 = vmatprep.subr.bf16.mxu0 0
      %625 = vmatpush1.bf16.msra.mxu0 %v603
      %626 = vmatprep.subr.bf16.mxu0 0
      %627 = vmatpush1.bf16.msra.mxu0 %v604
      %628 = vmatprep.subr.bf16.mxu0 0
      %629 = vmatpush1.bf16.msra.mxu0 %v605
      %630 = vmatprep.subr.bf16.mxu0 0
      %631 = vmatpush1.bf16.msra.mxu0 0
      %632 = vmatprep.subr.bf16.mxu0 0
      %633 = vmatpush1.bf16.msra.mxu0 0
      %634 = vmatprep.subr.bf16.mxu0 0
      %635 = vmatpush1.bf16.msra.mxu0 0
      %636 = vmatprep.subr.bf16.mxu0 0
      %637 = vmatpush1.bf16.msra.mxu0 0
      %638 = vmatprep.subr.bf16.mxu0 0
      %639 = vmatpush1.bf16.msra.mxu0 0
      %640 = vmatprep.subr.bf16.mxu0 0
      %641 = vmatpush1.bf16.msra.mxu0 0
      %642 = vmatprep.subr.bf16.mxu0 0
      %643 = vmatpush1.bf16.msra.mxu0 0
      %644 = vmatprep.subr.bf16.mxu0 0
      %645 = vmatpush1.bf16.msra.mxu0 0
      %646 = vmatprep.mubr.bf16.mxu0 0
      %647 = vmatmul.mubr.bf16.gmra.mrb[0].mxu0 %v542
      %v648 = vpop.f32.mrb[0].mxu0
      %v649 = vadd.f32 %v427, %v648
      %v650 = vpop.f32.mrb[0].mxu0
      %v651 = vpop.f32.mrb[0].mxu0
      %v652 = vadd.f32 %v431, %v651
      %v653 = vpop.f32.mrb[0].mxu0
      %654 = vmatprep.mubr.bf16.mxu0 0
      %655 = vmatmul.mubr.bf16.gmra.mrb[0].mxu0 %v543
      %v656 = vpop.f32.mrb[0].mxu0
      %v657 = vadd.f32 %v437, %v656
      %v658 = vpop.f32.mrb[0].mxu0
      %v659 = vpop.f32.mrb[0].mxu0
      %v660 = vadd.f32 %v441, %v659
      %v661 = vpop.f32.mrb[0].mxu0
      %662 = vmatprep.mubr.bf16.mxu0 0
      %663 = vmatmul.mubr.bf16.gmra.mrb[0].mxu0 %v544
      %v664 = vpop.f32.mrb[0].mxu0
      %v665 = vadd.f32 %v447, %v664
      %v666 = vpop.f32.mrb[0].mxu0
      %v667 = vpop.f32.mrb[0].mxu0
      %v668 = vadd.f32 %v451, %v667
      %v669 = vpop.f32.mrb[0].mxu0
      %670 = vmatprep.mubr.bf16.mxu0 0
      %671 = vmatmul.mubr.bf16.gmra.mrb[0].mxu0 %v545
      %v672 = vpop.f32.mrb[0].mxu0
      %v673 = vadd.f32 %v457, %v672
      %v674 = vpop.f32.mrb[0].mxu0
      %v675 = vpop.f32.mrb[0].mxu0
      %v676 = vadd.f32 %v461, %v675
      %v677 = vpop.f32.mrb[0].mxu0
      %678 = vmatprep.mubr.bf16.mxu0 0
      %679 = vmatmul.mubr.bf16.gmra.mrb[0].mxu0 %v546
      %v680 = vpop.f32.mrb[0].mxu0
      %v681 = vadd.f32 %v467, %v680
      %v682 = vpop.f32.mrb[0].mxu0
      %v683 = vpop.f32.mrb[0].mxu0
      %v684 = vadd.f32 %v471, %v683
      %v685 = vpop.f32.mrb[0].mxu0
      %686 = vmatprep.mubr.bf16.mxu0 0
      %687 = vmatmul.mubr.bf16.gmra.mrb[0].mxu0 %v547
      %v688 = vpop.f32.mrb[0].mxu0
      %v689 = vadd.f32 %v477, %v688
      %v690 = vpop.f32.mrb[0].mxu0
      %v691 = vpop.f32.mrb[0].mxu0
      %v692 = vadd.f32 %v481, %v691
      %v693 = vpop.f32.mrb[0].mxu0
      %694 = vmatprep.mubr.bf16.mxu0 0
      %695 = vmatmul.mubr.bf16.gmra.mrb[0].mxu0 %v548
      %v696 = vpop.f32.mrb[0].mxu0
      %v697 = vadd.f32 %v487, %v696
      %v698 = vpop.f32.mrb[0].mxu0
      %v699 = vpop.f32.mrb[0].mxu0
      %v700 = vadd.f32 %v491, %v699
      %v701 = vpop.f32.mrb[0].mxu0
      %702 = vmatprep.mubr.bf16.mxu0 0
      %703 = vmatmul.mubr.bf16.gmra.mrb[0].mxu0 %v549
      %v704 = vpop.f32.mrb[0].mxu0
      %v705 = vadd.f32 %v497, %v704
      %v706 = vpop.f32.mrb[0].mxu0
      %v707 = vpop.f32.mrb[0].mxu0
      %v708 = vadd.f32 %v501, %v707
      %v709 = vpop.f32.mrb[0].mxu0
      %710 = vdwg.mxu0
      %v711 = vld [vmem:[%s4] sm:$0x1]
      %v713 = vlaneseq
      %v714 = vshrl.u32 %v713, 7
      %v715 = vsub.s32 0, %v714
      %v716 = vrot.slane %v711, %v715
      %v718 = vadd.f32 %v649, %v716
      %v719 = vadd.f32 %v652, %v716
      %v720 = vadd.f32 %v657, %v716
      %v721 = vadd.f32 %v660, %v716
      %v722 = vadd.f32 %v665, %v716
      %v723 = vadd.f32 %v668, %v716
      %v724 = vadd.f32 %v673, %v716
      %v725 = vadd.f32 %v676, %v716
      %v726 = vadd.f32 %v681, %v716
      %v727 = vadd.f32 %v684, %v716
      %v728 = vadd.f32 %v689, %v716
      %v729 = vadd.f32 %v692, %v716
      %v730 = vadd.f32 %v697, %v716
      %v731 = vadd.f32 %v700, %v716
      %v732 = vadd.f32 %v705, %v716
      %v733 = vadd.f32 %v708, %v716
      %v734 = vmax.f32 %v718, 0.0
      %v735 = vmax.f32 %v719, 0.0
      %v736 = vmax.f32 %v720, 0.0
      %v737 = vmax.f32 %v721, 0.0
      %v738 = vmax.f32 %v722, 0.0
      %v739 = vmax.f32 %v723, 0.0
      %v740 = vmax.f32 %v724, 0.0
      %v741 = vmax.f32 %v725, 0.0
      %v742 = vmax.f32 %v726, 0.0
      %v743 = vmax.f32 %v727, 0.0
      %v744 = vmax.f32 %v728, 0.0
      %v745 = vmax.f32 %v729, 0.0
      %v746 = vmax.f32 %v730, 0.0
      %v747 = vmax.f32 %v731, 0.0
      %v748 = vmax.f32 %v732, 0.0
      %v749 = vmax.f32 %v733, 0.0
      %v750 = vld [vmem:[%s5] sm:$0xf]
      %v751 = vpack.c.bf16 %v735, %v734
      %v752 = vpack.c.bf16 %v737, %v736
      %v753 = vpack.c.bf16 %v739, %v738
      %v754 = vpack.c.bf16 %v741, %v740
      %v755 = vpack.c.bf16 %v743, %v742
      %v756 = vpack.c.bf16 %v745, %v744
      %v757 = vpack.c.bf16 %v747, %v746
      %v758 = vpack.c.bf16 %v749, %v748
      %vm759 = vcmask 523264
      %v761 = vsel %vm759, %v750, 0
      %v764 = vsel %vm759, %v751, 0
      %v767 = vsel %vm759, %v752, 0
      %v770 = vsel %vm759, %v753, 0
      %v773 = vsel %vm759, %v754, 0
      %v776 = vsel %vm759, %v755, 0
      %v779 = vsel %vm759, %v756, 0
      %v782 = vsel %vm759, %v757, 0
      %v785 = vsel %vm759, %v758, 0
      %787 = vmatprep.subr.bf16.mxu0 0
      %788 = vmatpush1.bf16.xpose.msra.mxu0 %v764
      %789 = vmatprep.subr.bf16.mxu0 0
      %790 = vmatpush1.bf16.xpose.msra.mxu0 %v767
      %791 = vmatprep.subr.bf16.mxu0 0
      %792 = vmatpush1.bf16.xpose.msra.mxu0 %v770
      %793 = vmatprep.subr.bf16.mxu0 0
      %794 = vmatpush1.bf16.xpose.msra.mxu0 %v773
      %795 = vmatprep.subr.bf16.mxu0 0
      %796 = vmatpush1.bf16.xpose.msra.mxu0 %v776
      %797 = vmatprep.subr.bf16.mxu0 0
      %798 = vmatpush1.bf16.xpose.msra.mxu0 %v779
      %799 = vmatprep.subr.bf16.mxu0 0
      %800 = vmatpush1.bf16.xpose.msra.mxu0 %v782
      %801 = vmatprep.subr.bf16.mxu0 0
      %802 = vmatpush1.bf16.xpose.msra.mxu0 %v785
      %803 = vmatprep.subr.bf16.mxu0 0
      %804 = vmatpush1.bf16.xpose.msra.mxu0 0
      %805 = vmatprep.subr.bf16.mxu0 0
      %806 = vmatpush1.bf16.xpose.msra.mxu0 0
      %807 = vmatprep.subr.bf16.mxu0 0
      %808 = vmatpush1.bf16.xpose.msra.mxu0 0
      %809 = vmatprep.subr.bf16.mxu0 0
      %810 = vmatpush1.bf16.xpose.msra.mxu0 0
      %811 = vmatprep.subr.bf16.mxu0 0
      %812 = vmatpush1.bf16.xpose.msra.mxu0 0
      %813 = vmatprep.subr.bf16.mxu0 0
      %814 = vmatpush1.bf16.xpose.msra.mxu0 0
      %815 = vmatprep.subr.bf16.mxu0 0
      %816 = vmatpush1.bf16.xpose.msra.mxu0 0
      %817 = vmatprep.subr.bf16.mxu0 0
      %818 = vmatpush1.bf16.xpose.msra.mxu0 0
      %819 = vmatprep.mubr.bf16.mxu0 0
      %820 = vmatmul.mubr.bf16.gmra.mrb[0].mxu0 %v761
      %v821 = vpop.f32.mrb[0].mxu0
      %v822 = vadd.f32 0.0, %v821
      %v823 = vpop.f32.mrb[0].mxu0
      %v824 = vpop.f32.mrb[0].mxu0
      %v825 = vpop.f32.mrb[0].mxu0
      %826 = vdwg.mxu0
      %v827 = vld [vmem:[#allocation2] sm:$0x1]
      %829 = vset.pattern.permute.xlu0 0
      %830 = vperm.xlu0 %829, %v827
      %v831 = vpop.permute.xlu0 %830
      %v833 = vlaneseq
      %v834 = vshrl.u32 %v833, 7
      %v835 = vsub.s32 0, %v834
      %v836 = vrot.slane %v831, %v835
      %v837 = vadd.f32 %v822, %v836
      %838 = vst [vmem:[%s278] sm:$0x1] %v837
      %p839 = scmp.lt.s32.totalorder %s20, 2
      %s840 = scalar_select %p839, %s20, 2
      %s841 = scalar_lea.vmem %s7, %s840
      // Predicated region
      $region49: #{ipec_forward.1} parent=47 // pred_check
        %p842 = pneg %p190
      $region50: #{ipec_forward.1} parent=47 // pred_check_branch
        %844 = sbr.rel (%p842) target = $region52
      $region51: #{ipec_forward.1} parent=47 // pred_region
        _
      $region52: #{ipec_forward.1} parent=47 // pred_fallthru
        _
    $region48: #{ipec_forward.1} parent=5 // pred_fallthru
      _
    %p845 = scmp.le.s32.totalorder 2, %s15
    // Predicated region
    $region53: #{ipec_forward.1} parent=5 // pred_check
      %p846 = pneg %p845
    $region54: #{ipec_forward.1} parent=5 // pred_check_branch
      %848 = sbr.rel (%p846) target = $region56
    $region55: #{ipec_forward.1} parent=5 // pred_region
      %s849 = ssub.s32 %s15, 2
      // Predicated region
      $region57: #{ipec_forward.1} parent=55 // pred_check
        %p850 = pneg %p196
      $region58: #{ipec_forward.1} parent=55 // pred_check_branch
        %852 = sbr.rel (%p850) target = $region60
      $region59: #{ipec_forward.1} parent=55 // pred_region
        %p853 = scmp.lt.s32.totalorder %s21, 2
        %s854 = scalar_select %p853, %s21, 2
        %s855 = scalar_lea.vmem %s7, %s854
      $region60: #{ipec_forward.1} parent=55 // pred_fallthru
        _
    $region56: #{ipec_forward.1} parent=5 // pred_fallthru
      _
  $region6: #{ipec_forward.1} parent=0 // loop_footer
    %s19 = sadd.s32 1, %s15
  $region7: #{ipec_forward.1} parent=0 // loop_footer_branch
    %14 = sbr.rel target = $region3
  $region8: #{ipec_forward.1} parent=0 // loop_exit
    _

</llo_original>
